<compile_context>
chip_gen: v7x
topology: tpu7x:2x2x1
jax: 0.10.0
libtpu: 0.0.40
codegen_flags: <defaults>
</compile_context>

<pallas_src>
import functools

import jax
import jax.numpy as jnp
from jax import lax
from jax.experimental import pallas as pl
from jax.experimental.pallas import tpu as pltpu

_LANE = 128
_SUBLANE = 8
_TILE = _LANE * _SUBLANE          # one (8,128) f32 tile = 1024 elements
_MAX_BLOCK_ROWS = 2048            # (2048,128) f32 = 1 MiB per pipeline buffer
_NUM_SPLITS = 2                   # leading "parallel" grid axis (v7x: 2 TCs)


def _cdiv(a, b):
    return (a + b - 1) // b


def _focal_loss_kernel(x_ref, t_ref, o_ref, *, gamma, block_rows,
                       blocks_per_split, total_rows, needs_mask):
    """Elementwise focal loss accumulated into a resident per-split output block.

    Grid = (num_splits, blocks_per_split); axis 0 is 'parallel' (per-core
    partials on multi-TC chips), axis 1 is the 'arbitrary' reduction axis.
    """
    j = pl.program_id(1)

    @pl.when(j == 0)
    def _():
        o_ref[...] = jnp.zeros_like(o_ref)

    # Cast in-kernel: keeps HBM traffic at the caller's dtype width.
    p = x_ref[...].astype(jnp.float32)
    t = t_ref[...].astype(jnp.float32)

    if needs_mask:
        # Rows whose *logical* global index falls beyond the real array
        # (partial edge blocks / clamped over-run blocks) are forced to
        # p = t = 1, which contributes exactly zero loss.
        c = pl.program_id(0)
        row_ids = lax.broadcasted_iota(jnp.int32, p.shape, 0)
        global_row = (c * blocks_per_split + j) * block_rows + row_ids
        valid = global_row < total_rows
        p = jnp.where(valid, p, 1.0)
        t = jnp.where(valid, t, 1.0)

    # PyTorch F.binary_cross_entropy clamps each log term at -100.
    log_p = jnp.maximum(jnp.log(p), -100.0)
    log_1mp = jnp.maximum(jnp.log(1.0 - p), -100.0)
    bce = -(t * log_p + (1.0 - t) * log_1mp)

    pt = jnp.exp(-bce)
    om_pt = 1.0 - pt

    # (1 - pt) ** gamma: unroll integer gammas (avoids pow -> exp(gamma*log(x))).
    g = float(gamma)
    if g == 0.0:
        mod = jnp.ones_like(om_pt)
    elif g.is_integer() and 0.0 < g <= 8.0:
        mod = om_pt
        for _ in range(int(g) - 1):
            mod = mod * om_pt
    else:
        mod = om_pt ** g          # non-integer gamma: fall back to pow

    # alpha and 1/N are applied once on the final scalar (hoisted out).
    o_ref[...] += mod * bce


def focal_loss(inputs, targets, alpha=1.0, gamma=2.0,
               max_block_rows=_MAX_BLOCK_ROWS):
    """Pallas TPU focal loss. inputs/targets: same shape, probabilities in [0,1]."""
    assert inputs.shape == targets.shape
    assert max_block_rows % _SUBLANE == 0
    n = inputs.size

    x = inputs.reshape(-1)
    t = targets.reshape(-1)

    # Pad only if numel is not a multiple of one (8,128) tile (pad value
    # p = t = 1 gives exactly zero loss).  Well-aligned NCHW shapes need no
    # pad and therefore no extra host-side HBM copy.
    padded = _cdiv(n, _TILE) * _TILE
    pad = padded - n
    if pad:
        x = jnp.concatenate([x, jnp.ones((pad,), x.dtype)])
        t = jnp.concatenate([t, jnp.ones((pad,), t.dtype)])

    rows = padded // _LANE                     # multiple of 8
    x2 = x.reshape(rows, _LANE)
    t2 = t.reshape(rows, _LANE)

    block_rows = min(max_block_rows, rows)     # both multiples of 8
    total_blocks = _cdiv(rows, block_rows)
    num_splits = _NUM_SPLITS if total_blocks > 1 else 1
    bpc = _cdiv(total_blocks, num_splits)
    # Garbage rows can appear when the logical grid coverage over-runs the array.
    needs_mask = (num_splits * bpc * block_rows) != rows

    def in_map(c, j):
        blk = c * bpc + j
        if needs_mask:
            # Logical blocks past the end get clamped onto a valid block; their
            # contribution is zeroed by the in-kernel row mask.
            blk = jnp.minimum(blk, total_blocks - 1)
        return (blk, 0)

    kernel = functools.partial(
        _focal_loss_kernel,
        gamma=float(gamma),
        block_rows=block_rows,
        blocks_per_split=bpc,
        total_rows=rows,
        needs_mask=needs_mask,
    )

    partials = pl.pallas_call(
        kernel,
        out_shape=jax.ShapeDtypeStruct((num_splits * block_rows, _LANE),
                                       jnp.float32),
        grid_spec=pltpu.PrefetchScalarGridSpec(
            num_scalar_prefetch=0,
            grid=(num_splits, bpc),
            in_specs=[
                pl.BlockSpec((block_rows, _LANE), in_map),
                pl.BlockSpec((block_rows, _LANE), in_map),
            ],
            out_specs=pl.BlockSpec((block_rows, _LANE), lambda c, j: (c, 0)),
        ),
        compiler_params=pltpu.CompilerParams(
            dimension_semantics=("parallel", "arbitrary"),
        ),
    )(x2, t2)

    # Final scalar reduce + hoisted alpha / mean scale (single cheap XLA reduce).
    return jnp.sum(partials) * (float(alpha) / float(n))


def focal_loss_ref(inputs, targets, alpha=1.0, gamma=2.0):
    """Pure-JAX reference mirroring the PyTorch module."""
    p = inputs.astype(jnp.float32)
    t = targets.astype(jnp.float32)
    log_p = jnp.maximum(jnp.log(p), -100.0)
    log_1mp = jnp.maximum(jnp.log(1.0 - p), -100.0)
    bce = -(t * log_p + (1.0 - t) * log_1mp)
    pt = jnp.exp(-bce)
    return jnp.mean(alpha * (1.0 - pt) ** gamma * bce)


if __name__ == "__main__":
    key = jax.random.PRNGKey(0)
    k1, k2, k3, k4 = jax.random.split(key, 4)

    # Case 1: NCHW probability map (well-aligned: no padding, single block).
    B, C, H, W = 2, 4, 16, 16
    inputs = jax.nn.sigmoid(jax.random.normal(k1, (B, C, H, W), jnp.float32))
    targets = (jax.random.uniform(k2, (B, C, H, W)) > 0.5).astype(jnp.float32)

    out = jax.block_until_ready(focal_loss(inputs, targets, alpha=1.0, gamma=2.0))
    ref = focal_loss_ref(inputs, targets, alpha=1.0, gamma=2.0)
    assert jnp.allclose(out, ref, rtol=1e-5, atol=1e-6), (out, ref)

    # Case 2: awkward shape + tiny block size -> exercises multi-block grid, the
    # 2-way parallel split, block-index clamping and the in-kernel row mask.
    shp = (2, 3, 25, 41)
    inputs2 = jax.nn.sigmoid(jax.random.normal(k3, shp, jnp.float32))
    targets2 = (jax.random.uniform(k4, shp) > 0.5).astype(jnp.float32)

    out2 = jax.block_until_ready(
        focal_loss(inputs2, targets2, alpha=0.25, gamma=2.0, max_block_rows=8))
    ref2 = focal_loss_ref(inputs2, targets2, alpha=0.25, gamma=2.0)
    assert jnp.allclose(out2, ref2, rtol=1e-5, atol=1e-6), (out2, ref2)

    print("KERNEL_OK")
</pallas_src>

<mosaic_0001>
module attributes {stable_mosaic.version = 11 : i64} {
  func.func @_focal_loss_kernel(%arg0: i32, %arg1: i32, %arg2: memref<16x128xf32, #tpu.memory_space<vmem>>, %arg3: memref<16x128xf32, #tpu.memory_space<vmem>>, %arg4: memref<16x128xf32, #tpu.memory_space<vmem>>) attributes {dimension_semantics = [#tpu.dimension_semantics<parallel>, #tpu.dimension_semantics<arbitrary>], iteration_bounds = array<i64: 1, 1>, scalar_prefetch = 0 : i64, scratch_operands = 0 : i64, tpu.core_type = #tpu.core_type<tc>, window_params = [{transform_indices = @transform_0, window_bounds = array<i64: 16, 128>}, {transform_indices = @transform_1, window_bounds = array<i64: 16, 128>}, {transform_indices = @transform_2, window_bounds = array<i64: 16, 128>}]} {
    %c0_i32 = arith.constant 0 : i32
    %0 = arith.cmpi eq, %arg1, %c0_i32 : i32
    %1 = arith.extui %0 : i1 to i32
    %c0_i32_0 = arith.constant 0 : i32
    %2 = arith.cmpi ne, %1, %c0_i32_0 : i32
    scf.if %2 {
      %cst_14 = arith.constant 0.000000e+00 : f32
      %30 = vector.broadcast %cst_14 : f32 to vector<16x128xf32>
      %c0_15 = arith.constant 0 : index
      %c0_16 = arith.constant 0 : index
      %31 = vector.load %arg4[%c0_15, %c0_16] : memref<16x128xf32, #tpu.memory_space<vmem>>, vector<16x128xf32>
      tpu.vector_store %arg4[%c0_15, %c0_16], %30 {strides = array<i32>} : memref<16x128xf32, #tpu.memory_space<vmem>>, vector<16x128xf32>,
    } else {
    }
    %c0 = arith.constant 0 : index
    %c0_1 = arith.constant 0 : index
    %3 = vector.load %arg2[%c0, %c0_1] : memref<16x128xf32, #tpu.memory_space<vmem>>, vector<16x128xf32>
    %c0_2 = arith.constant 0 : index
    %c0_3 = arith.constant 0 : index
    %4 = vector.load %arg3[%c0_2, %c0_3] : memref<16x128xf32, #tpu.memory_space<vmem>>, vector<16x128xf32>
    %5 = math.log %3 : vector<16x128xf32>
    %cst = arith.constant -1.000000e+02 : f32
    %6 = vector.broadcast %cst : f32 to vector<16x128xf32>
    %7 = arith.maximumf %5, %6 : vector<16x128xf32>
    %cst_4 = arith.constant 1.000000e+00 : f32
    %8 = vector.broadcast %cst_4 : f32 to vector<16x128xf32>
    %9 = arith.subf %8, %3 : vector<16x128xf32>
    %10 = math.log %9 : vector<16x128xf32>
    %cst_5 = arith.constant -1.000000e+02 : f32
    %11 = vector.broadcast %cst_5 : f32 to vector<16x128xf32>
    %12 = arith.maximumf %10, %11 : vector<16x128xf32>
    %13 = arith.mulf %4, %7 : vector<16x128xf32>
    %cst_6 = arith.constant 1.000000e+00 : f32
    %14 = vector.broadcast %cst_6 : f32 to vector<16x128xf32>
    %15 = arith.subf %14, %4 : vector<16x128xf32>
    %16 = arith.mulf %15, %12 : vector<16x128xf32>
    %17 = arith.addf %13, %16 : vector<16x128xf32>
    %cst_7 = arith.constant 0.000000e+00 : f32
    %18 = vector.broadcast %cst_7 : f32 to vector<16x128xf32>
    %19 = arith.subf %18, %17 : vector<16x128xf32>
    %cst_8 = arith.constant 0.000000e+00 : f32
    %20 = vector.broadcast %cst_8 : f32 to vector<16x128xf32>
    %21 = arith.subf %20, %19 : vector<16x128xf32>
    %22 = math.exp %21 : vector<16x128xf32>
    %cst_9 = arith.constant 1.000000e+00 : f32
    %23 = vector.broadcast %cst_9 : f32 to vector<16x128xf32>
    %24 = arith.subf %23, %22 : vector<16x128xf32>
    %25 = arith.mulf %24, %24 : vector<16x128xf32>
    %c0_10 = arith.constant 0 : index
    %c0_11 = arith.constant 0 : index
    %26 = vector.load %arg4[%c0_10, %c0_11] : memref<16x128xf32, #tpu.memory_space<vmem>>, vector<16x128xf32>
    %27 = arith.mulf %25, %19 : vector<16x128xf32>
    %28 = arith.addf %26, %27 : vector<16x128xf32>
    %c0_12 = arith.constant 0 : index
    %c0_13 = arith.constant 0 : index
    %29 = vector.load %arg4[%c0_12, %c0_13] : memref<16x128xf32, #tpu.memory_space<vmem>>, vector<16x128xf32>
    tpu.vector_store %arg4[%c0_12, %c0_13], %28 {strides = array<i32>} : memref<16x128xf32, #tpu.memory_space<vmem>>, vector<16x128xf32>,
    return
  }
  func.func @transform_0(%arg0: i32, %arg1: i32) -> (i32, i32) {
    %c1_i32 = arith.constant 1 : i32
    %0 = arith.muli %arg0, %c1_i32 : i32
    %1 = arith.addi %0, %arg1 : i32
    %c0_i32 = arith.constant 0 : i32
    %c0_i32_0 = arith.constant 0 : i32
    return %1, %c0_i32 : i32, i32
  }
  func.func @transform_1(%arg0: i32, %arg1: i32) -> (i32, i32) {
    %c1_i32 = arith.constant 1 : i32
    %0 = arith.muli %arg0, %c1_i32 : i32
    %1 = arith.addi %0, %arg1 : i32
    %c0_i32 = arith.constant 0 : i32
    %c0_i32_0 = arith.constant 0 : i32
    return %1, %c0_i32 : i32, i32
  }
  func.func @transform_2(%arg0: i32, %arg1: i32) -> (i32, i32) {
    %c0_i32 = arith.constant 0 : i32
    %c0_i32_0 = arith.constant 0 : i32
    return %arg0, %c0_i32 : i32, i32
  }
}

</mosaic_0001>

<llo_original>
// kernel: tpu_custom_call.1
$region0: #{tpu_custom_call.1}
  #allocation0 [shape = 'u32[]', space=smem, size = 0x4, offset = 0x4, fixed_abs, tag = 'smem constant byte address 0x4 - core index']
  #allocation1 [shape = 'u32[144,128]{1,0:T(1,128)}', space=vmem, size = 0x12000, scoped, tag = 'internal scratch']
  %s0 = inlined_call_operand.hbm [shape: f32[16,128], index: 0, kind: input, shape index: {}]
  %s1 = inlined_call_operand.hbm [shape: f32[16,128], index: 1, kind: input, shape index: {}]
  %s2 = inlined_call_operand.hbm [shape: f32[16,128], index: 2, kind: output, shape index: {}]
  %s3 = sld [smem:[#allocation0]]
  $region30: #{tpu_custom_call.1} parent=0
    _
  %s5 = ssub.s32 1, %s3
  %s6 = scalar_select 0, %s5, %s3
  $region1: #{tpu_custom_call.1} parent=0
    #allocation2 [shape = 'u8[8192]{0}', space=vmem, size = 0x2000, scoped, tag = 'input window, operand 0, single buffered']
    #allocation3 [shape = 's32[1]{0}', space=sflag, size = 0x4, scoped, tag = 'scoped memory for tpu_custom_call.1']
    #allocation4 [shape = 's32[1]{0}', space=sflag, size = 0x4, scoped, tag = 'scoped memory for tpu_custom_call.1']
    #allocation5 [shape = 'u8[8192]{0}', space=vmem, size = 0x2000, scoped, tag = 'input window, operand 1, single buffered']
    #allocation6 [shape = 's32[1]{0}', space=sflag, size = 0x4, scoped, tag = 'scoped memory for tpu_custom_call.1']
    #allocation7 [shape = 'u8[8192]{0}', space=vmem, size = 0x2000, scoped, tag = 'output window, operand 0, single buffered']
    %7 = vsyncpa [#allocation3], 0
    %8 = vsyncpa [#allocation6], 0
    %9 = vsyncpa [#allocation4], 0
    // Predicated region
    $region2: #{tpu_custom_call.1} parent=1 // pred_check
      _
    $region3: #{tpu_custom_call.1} parent=1 // pred_check_branch
      %11 = sbr.rel (0) target = $region5
    $region4: #{tpu_custom_call.1} parent=1 // pred_region
      %s12 = sadd.s32 0, 0
      %s13 = smul.u32 2, %s12
      %s15 = ssub.s32 256, 256
      %16 = vsyncadd [#allocation3], %s15
      %s17 = smul.addr %s13, 128
      %s18 = scalar_lea.hbm %s0, %s17
      %s19 = sshll.u32 [#allocation2], 4
      %s20 = int_to_ptr.vmem [resolvable:$true] %s19
      %25 = dma.hbm_to_vmem [thread:$0]  %s18, 256, %s20, [#allocation3], 128, 128, 8
    $region5: #{tpu_custom_call.1} parent=1 // pred_fallthru
      _
    // Predicated region
    $region6: #{tpu_custom_call.1} parent=1 // pred_check
      _
    $region7: #{tpu_custom_call.1} parent=1 // pred_check_branch
      %27 = sbr.rel (0) target = $region9
    $region8: #{tpu_custom_call.1} parent=1 // pred_region
      %s28 = sadd.s32 0, 0
      %s29 = smul.u32 2, %s28
      %s31 = ssub.s32 256, 256
      %32 = vsyncadd [#allocation6], %s31
      %s33 = smul.addr %s29, 128
      %s34 = scalar_lea.hbm %s1, %s33
      %s35 = sshll.u32 [#allocation5], 4
      %s36 = int_to_ptr.vmem [resolvable:$true] %s35
      %41 = dma.hbm_to_vmem [thread:$0]  %s34, 256, %s36, [#allocation6], 128, 128, 8
    $region9: #{tpu_custom_call.1} parent=1 // pred_fallthru
      _
    // Predicated region
    $region10: #{tpu_custom_call.1} parent=1 // pred_check
      _
    $region11: #{tpu_custom_call.1} parent=1 // pred_check_branch
      %43 = sbr.rel (0) target = $region13
    $region12: #{tpu_custom_call.1} parent=1 // pred_region
      %44 = dma.done [#allocation3], 256
    $region13: #{tpu_custom_call.1} parent=1 // pred_fallthru
      _
    // Predicated region
    $region14: #{tpu_custom_call.1} parent=1 // pred_check
      _
    $region15: #{tpu_custom_call.1} parent=1 // pred_check_branch
      %46 = sbr.rel (0) target = $region17
    $region16: #{tpu_custom_call.1} parent=1 // pred_region
      %47 = dma.done [#allocation6], 256
    $region17: #{tpu_custom_call.1} parent=1 // pred_fallthru
      _
    %s48 = sadd.s32 0, 0
    %s49 = smul.u32 2, %s48
    %s50 = sadd.s32 0, 0
    %s51 = smul.u32 2, %s50
    %p52 = scmp.eq.s32.totalorder 0, 0
    // Predicated region
    $region18: #{tpu_custom_call.1} parent=1 // pred_check
      %p53 = pneg %p52
    $region19: #{tpu_custom_call.1} parent=1 // pred_check_branch
      %55 = sbr.rel (%p53) target = $region21
    $region20: #{tpu_custom_call.1} parent=1 // pred_region
      %56 = vst [vmem:[#allocation7] sm:$0xff] 0.0
      %57 = vst [vmem:[#allocation7 + $0x8] sm:$0xff] 0.0
    $region21: #{tpu_custom_call.1} parent=1 // pred_fallthru
      _
    %v58 = vld [vmem:[#allocation2] sm:$0xff]
    %v59 = vld [vmem:[#allocation2 + $0x8] sm:$0xff]
    %v60 = vld [vmem:[#allocation5] sm:$0xff]
    %v61 = vld [vmem:[#allocation5 + $0x8] sm:$0xff]
    %v62 = vlog2.pop %v58
    %v63 = vmul.f32 %v62, 0.6931472
    %v64 = vlog2.pop %v59
    %v65 = vmul.f32 %v64, 0.6931472
    %v66 = vmax.f32 %v63, -100.0
    %v67 = vmax.f32 %v65, -100.0
    %v68 = vsub.f32 1.0, %v58
    %v69 = vsub.f32 1.0, %v59
    %v70 = vlog2.pop %v68
    %v71 = vmul.f32 %v70, 0.6931472
    %v72 = vlog2.pop %v69
    %v73 = vmul.f32 %v72, 0.6931472
    %v74 = vmax.f32 %v71, -100.0
    %v75 = vmax.f32 %v73, -100.0
    %v76 = vmul.f32 %v60, %v66
    %v77 = vmul.f32 %v61, %v67
    %v78 = vsub.f32 1.0, %v60
    %v79 = vsub.f32 1.0, %v61
    %v80 = vmul.f32 %v78, %v74
    %v81 = vmul.f32 %v79, %v75
    %v82 = vadd.f32 %v76, %v80
    %v83 = vadd.f32 %v77, %v81
    %v84 = vsub.f32 0.0, %v82
    %v85 = vsub.f32 0.0, %v83
    %v86 = vsub.f32 0.0, %v84
    %v87 = vsub.f32 0.0, %v85
    %v88 = vmul.f32 %v86, 1.442695
    %v89 = vpow.pop %v88
    %v90 = vmul.f32 %v87, 1.442695
    %v91 = vpow.pop %v90
    %v92 = vsub.f32 1.0, %v89
    %v93 = vsub.f32 1.0, %v91
    %v94 = vmul.f32 %v92, %v92
    %v95 = vmul.f32 %v93, %v93
    %v96 = vld [vmem:[#allocation7] sm:$0xff]
    %v97 = vld [vmem:[#allocation7 + $0x8] sm:$0xff]
    %v98 = vmul.f32 %v94, %v84
    %v99 = vmul.f32 %v95, %v85
    %v100 = vadd.f32 %v96, %v98
    %v101 = vadd.f32 %v97, %v99
    %102 = vst [vmem:[#allocation7] sm:$0xff] %v100
    %103 = vst [vmem:[#allocation7 + $0x8] sm:$0xff] %v101
    // Predicated region
    $region22: #{tpu_custom_call.1} parent=1 // pred_check
      _
    $region23: #{tpu_custom_call.1} parent=1 // pred_check_branch
      %105 = sbr.rel (0) target = $region25
    $region24: #{tpu_custom_call.1} parent=1 // pred_region
      %s107 = ssub.s32 256, 256
      %108 = vsyncadd [#allocation4], %s107
      %s109 = sshll.u32 [#allocation7], 4
      %s110 = int_to_ptr.vmem [resolvable:$true] %s109
      %115 = dma.vmem_to_hbm [thread:$0]  %s110, 256, %s2, [#allocation4], 128, 128, 8
    $region25: #{tpu_custom_call.1} parent=1 // pred_fallthru
      _
    // Predicated region
    $region26: #{tpu_custom_call.1} parent=1 // pred_check
      _
    $region27: #{tpu_custom_call.1} parent=1 // pred_check_branch
      %117 = sbr.rel (0) target = $region29
    $region28: #{tpu_custom_call.1} parent=1 // pred_region
      %118 = dma.done [#allocation4], 256
    $region29: #{tpu_custom_call.1} parent=1 // pred_fallthru
      _
    %119 = vsyncpa [#allocation3], 1
    %120 = vsyncpa [#allocation6], 1
    %121 = vsyncpa [#allocation4], 1

</llo_original>
